<compile_context>
chip_gen: v5e
topology: v5e:2x2
jax: 0.10.0
libtpu: 0.0.40
codegen_flags: <defaults>
</compile_context>

<pallas_src>
import math

import jax
import jax.numpy as jnp
from jax.experimental import pallas as pl
from jax.experimental.pallas import tpu as pltpu

# Stand-in dimensions (original: resnet18 feat=512, temporal hidden=1024,
# MBart-large d_model=1024, 16 heads, 12 layers, ffn=4096).
D_RES = 128     # stand-in for resnet18's 512-dim frame features
D_MODEL = 128   # stand-in for 1024 (inplanes = planes = d_model)
N_HEADS = 4
D_FFN = 256
N_LAYERS = 2
K_CONV = 5
MAX_POS = 16
BN_EPS = 1e-5
LN_EPS = 1e-5


def _fixed_spec(shape):
    zeros = (0,) * len(shape)
    return pl.BlockSpec(shape, lambda *_: zeros)


def _ln(x, g, b):
    mu = jnp.mean(x, axis=-1, keepdims=True)
    var = jnp.mean(jnp.square(x - mu), axis=-1, keepdims=True)
    return (x - mu) * jax.lax.rsqrt(var + LN_EPS) * g + b


# ----------------------------- frame stem kernel -----------------------------

def _frame_feat_kernel(x_ref, w_ref, b_ref, o_ref):
    # TODO(synk): pretrained ResNet18 backbone replaced by a GAP + linear stem.
    # Rows are [c0|c1|c2] pixel blocks (channels folded into the lane axis), so
    # GAP is a dense, 128-aligned lane reduction and the 3-deep contraction
    # stays on the VPU (an MXU pass over a 3-deep contraction would be wasted).
    C, D = w_ref.shape
    HW = x_ref.shape[1] // C
    x = x_ref[...]
    w = w_ref[...]
    acc = jnp.zeros((x.shape[0], D), jnp.float32)
    for c in range(C):
        gap_c = jnp.mean(x[:, c * HW:(c + 1) * HW], axis=-1, keepdims=True)
        acc = acc + gap_c * w[c:c + 1, :]
    o_ref[...] = jnp.maximum(acc + b_ref[...], 0.0)


def pallas_frame_features(x2d, w, b):
    # x2d: (F, C*H*W) with channel-contiguous pixel blocks per row.
    F_, CHW = x2d.shape
    C, D = w.shape
    # Big frame tiles: all frames in one step when F is small, otherwise the
    # largest divisor <= 64 (amortizes the ~0.35us per-grid-step cost);
    # "parallel" still lets v7x shard the remaining steps across its 2 TCs.
    fblk = F_
    if F_ > 64:
        for cand in (64, 56, 48, 40, 32, 24, 16, 8):
            if F_ % cand == 0:
                fblk = cand
                break
    return pl.pallas_call(
        _frame_feat_kernel,
        grid=(F_ // fblk,),
        in_specs=[
            pl.BlockSpec((fblk, CHW), lambda i: (i, 0)),
            pl.BlockSpec((C, D), lambda i: (0, 0)),
            pl.BlockSpec((1, D), lambda i: (0, 0)),
        ],
        out_specs=pl.BlockSpec((fblk, D), lambda i: (i, 0)),
        out_shape=jax.ShapeDtypeStruct((F_, D), jnp.float32),
        compiler_params=pltpu.CompilerParams(dimension_semantics=("parallel",)),
    )(x2d, w, b)


# ------------------- fused TemporalConv + encoder + lm_head ------------------

def _conv_encoder_kernel(x_ref, mask_ref,
                         tc1w_ref, tc1sc_ref, tc1sh_ref,
                         tc2w_ref, tc2sc_ref, tc2sh_ref,
                         cls_ref, pos_ref, embg_ref, embb_ref,
                         ln1g_ref, ln1b_ref, wqkv_ref, bqkv_ref,
                         wo_ref, bo_ref,
                         ln2g_ref, ln2b_ref, w1_ref, b1_ref, w2_ref, b2_ref,
                         fing_ref, finb_ref, lmw_ref, o_ref):
    K = K_CONV
    L = x_ref.shape[1]
    tc1 = L - (K - 1)
    tp1 = tc1 // 2
    tc2 = tp1 - (K - 1)
    tp2 = tc2 // 2
    S, D = pos_ref.shape                       # S already padded to mult. of 8
    d_head = D // N_HEADS
    att_scale = d_head ** -0.5
    n_layers = wqkv_ref.shape[0]
    bf16 = jnp.bfloat16

    # ---- TemporalConv ['K5','P2','K5','P2']: (im2col conv1d + folded
    # eval-mode BatchNorm + ReLU + MaxPool1d(2)) x 2, all in VMEM. ----
    # TODO(synk): BatchNorm uses eval-mode running stats; dropout omitted.
    x = x_ref[0].astype(bf16)                  # cast source once, not 5x cols
    cols1 = jnp.concatenate([x[k:k + tc1, :] for k in range(K)], axis=-1)
    y1 = jnp.dot(cols1, tc1w_ref[...], preferred_element_type=jnp.float32)
    y1 = jnp.maximum(y1 * tc1sc_ref[...] + tc1sh_ref[...], 0.0)      # (tc1, D)
    y1 = y1[:2 * tp1].reshape(tp1, 2, D)
    p1 = jnp.maximum(y1[:, 0, :], y1[:, 1, :]).astype(bf16)          # (tp1, D)

    cols2 = jnp.concatenate([p1[k:k + tc2, :] for k in range(K)], axis=-1)
    y2 = jnp.dot(cols2, tc2w_ref[...], preferred_element_type=jnp.float32)
    y2 = jnp.maximum(y2 * tc2sc_ref[...] + tc2sh_ref[...], 0.0)      # (tc2, D)
    y2 = y2[:2 * tp2].reshape(tp2, 2, D)
    feats = jnp.maximum(y2[:, 0, :], y2[:, 1, :])                    # (tp2, D)

    # ---- tokens: [CLS] + conv features + zero rows up to S ----
    parts = [cls_ref[...], feats]
    pad_rows = S - (tp2 + 1)
    if pad_rows > 0:
        parts.append(jnp.zeros((pad_rows, D), jnp.float32))
    h = jnp.concatenate(parts, axis=0)                               # (S, D)

    # scale_embedding=True + learned positions (offset-2 slice done outside)
    h = h * math.sqrt(D) + pos_ref[...]
    h = _ln(h, embg_ref[...], embb_ref[...])

    # additive attention bias from the mask (1 = keep, 0 = padded key)
    bias = (1.0 - mask_ref[...]) * -1e9                              # (1, 1, S)

    # TODO(synk): at real MBart-large dims the stacked weights do not fit
    # VMEM; make the layer a grid axis with per-layer streamed BlockSpecs.
    for l in range(n_layers):
        # --- self-attention (pre-LN), fused QKV, head-batched contraction ---
        resid = h
        hn = _ln(h, ln1g_ref[l], ln1b_ref[l])
        qkv = jnp.dot(hn.astype(bf16), wqkv_ref[l],
                      preferred_element_type=jnp.float32) + bqkv_ref[l]

        def heads(t):   # (S, D) -> (H, S, d_head)
            return jnp.transpose(t.reshape(S, N_HEADS, d_head), (1, 0, 2))

        q = heads(qkv[:, :D]) * att_scale         # 128-aligned lane slices
        k = heads(qkv[:, D:2 * D])
        v = heads(qkv[:, 2 * D:])
        s = jnp.einsum("hqd,hkd->hqk", q, k,
                       preferred_element_type=jnp.float32) + bias
        s = s - jnp.max(s, axis=-1, keepdims=True)
        e = jnp.exp(s)
        p = e * pl.reciprocal(jnp.sum(e, axis=-1, keepdims=True), approx=True)
        ctx = jnp.einsum("hqk,hkd->hqd", p, v,
                         preferred_element_type=jnp.float32)
        a = jnp.transpose(ctx, (1, 0, 2)).reshape(S, D)
        h = resid + jnp.dot(a.astype(bf16), wo_ref[l],
                            preferred_element_type=jnp.float32) + bo_ref[l]

        # --- FFN block (pre-LN) ---
        resid = h
        hn = _ln(h, ln2g_ref[l], ln2b_ref[l])
        f = jnp.dot(hn.astype(bf16), w1_ref[l],
                    preferred_element_type=jnp.float32) + b1_ref[l]
        # TODO(synk): HF MBart uses erf-GELU; tanh approximation used here.
        f = jax.nn.gelu(f, approximate=True)
        f = jnp.dot(f.astype(bf16), w2_ref[l],
                    preferred_element_type=jnp.float32) + b2_ref[l]
        h = resid + f

    h = _ln(h, fing_ref[...], finb_ref[...])
    o_ref[0] = jnp.dot(h[0:1, :].astype(bf16), lmw_ref[...],
                       preferred_element_type=jnp.float32)   # lm_head, no bias


def pallas_conv_encoder(x, attn_mask, params):
    # x: (B, L, D_RES) padded frame features, attn_mask: (B, N) with N = token
    # count after TemporalConv.  One pallas_call on grid=(B,), "parallel".
    B, L, C_in = x.shape
    tc1 = L - (K_CONV - 1)
    tp1 = tc1 // 2
    tc2 = tp1 - (K_CONV - 1)
    tp2 = tc2 // 2
    s_true = tp2 + 1                             # CLS + conv tokens
    s_pad = ((s_true + 7) // 8) * 8              # sublane-aligned token count
    D = D_MODEL
    enc = params["enc"]

    # attention mask: prepend 1 for CLS (F.pad value=1.0), append 0 for the
    # alignment padding so padded keys are masked out.
    mask = jnp.pad(attn_mask, ((0, 0), (1, 0)), constant_values=1.0)
    mask = jnp.pad(mask, ((0, 0), (0, s_pad - s_true)), constant_values=0.0)
    mask = mask.reshape(B, 1, s_pad)
    pos = enc["pos_emb"][2:2 + s_pad]            # learned positions, offset = 2
    cls = params["cls_token"].reshape(1, D)

    inputs = (x, mask,
              params["tc1_w"], params["tc1_scale"], params["tc1_shift"],
              params["tc2_w"], params["tc2_scale"], params["tc2_shift"],
              cls, pos, enc["ln_emb_g"], enc["ln_emb_b"],
              enc["ln1_g"], enc["ln1_b"], enc["w_qkv"], enc["b_qkv"],
              enc["w_o"], enc["b_o"],
              enc["ln2_g"], enc["ln2_b"], enc["w1"], enc["b1"],
              enc["w2"], enc["b2"],
              enc["ln_final_g"], enc["ln_final_b"], params["lm_head_w"])

    in_specs = [pl.BlockSpec((1, L, C_in), lambda b: (b, 0, 0)),
                pl.BlockSpec((1, 1, s_pad), lambda b: (b, 0, 0))]
    # constant index_maps -> weights stay VMEM-resident across grid steps
    in_specs += [_fixed_spec(a.shape) for a in inputs[2:]]

    out = pl.pallas_call(
        _conv_encoder_kernel,
        grid=(B,),
        in_specs=in_specs,
        out_specs=pl.BlockSpec((1, 1, D), lambda b: (b, 0, 0)),
        out_shape=jax.ShapeDtypeStruct((B, 1, D), jnp.float32),
        compiler_params=pltpu.CompilerParams(
            dimension_semantics=("parallel",),
            # safe on all gens (>= v5e's 16 MiB scoped default, <= v6e/v7x
            # defaults); actual footprint at these stand-in dims is ~2 MiB.
            vmem_limit_bytes=32 * 1024 * 1024),
    )(*inputs)
    return out[:, 0, :]


# ------------------------------ glue (plain JAX) -----------------------------

def fold_bn(conv_bias, gamma, beta, running_mean, running_var):
    scale = gamma / jnp.sqrt(running_var + BN_EPS)
    shift = (conv_bias - running_mean) * scale + beta
    return scale, shift


def image_clip_forward(params, src_input):
    frames = src_input["input_ids"]               # (F, 3, H, W) NCHW like torch
    lengths = src_input["src_length_batch"]
    attn_mask = src_input["attention_mask"]       # (B, N) float

    F_, C, H, W = frames.shape
    feat = pallas_frame_features(frames.reshape(F_, C * H * W),
                                 params["res_proj_w"], params["res_proj_b"])

    # pad_sequence(batch_first=True); equal per-video lengths -> plain reshape.
    # TODO(synk): ragged lengths (true pad_sequence) not implemented.
    B = len(lengths)
    L = lengths[0]
    x = feat.reshape(B, L, D_RES)

    # TemporalConv + cls_token + mask pad + MBart encoder + lm_head, fused.
    return pallas_conv_encoder(x, attn_mask, params)   # (B, D_MODEL)


# ------------------------------ param init ----------------------------------

def init_params(key):
    keys = iter(jax.random.split(key, 64))
    bf16 = jnp.bfloat16

    def nrm(shape, std=0.02, dtype=jnp.float32):
        return (std * jax.random.normal(next(keys), shape, jnp.float32)).astype(dtype)

    params = {
        "res_proj_w": nrm((3, D_RES), 0.2),
        "res_proj_b": nrm((1, D_RES), 0.2),
        "cls_token": nrm((1, 1, D_MODEL), 1.0),            # torch.randn
        "lm_head_w": nrm((D_MODEL, D_MODEL), dtype=bf16),  # Linear, no bias
    }
    for name, cin in (("tc1", D_RES), ("tc2", D_MODEL)):
        # conv weight pre-reshaped to im2col layout (K*C_in, C_out), bf16
        params[name + "_w"] = nrm((K_CONV * cin, D_MODEL), 0.1, dtype=bf16)
        conv_bias = 0.1 * jax.random.normal(next(keys), (D_MODEL,), jnp.float32)
        gamma = jnp.ones((D_MODEL,), jnp.float32)
        beta = jnp.zeros((D_MODEL,), jnp.float32)
        rmean = jnp.zeros((D_MODEL,), jnp.float32)
        rvar = jnp.ones((D_MODEL,), jnp.float32)
        scale, shift = fold_bn(conv_bias, gamma, beta, rmean, rvar)
        params[name + "_scale"] = scale.reshape(1, D_MODEL)
        params[name + "_shift"] = shift.reshape(1, D_MODEL)

    enc = {
        "pos_emb": nrm((MAX_POS + 2, D_MODEL)),
        "ln_emb_g": jnp.ones((1, D_MODEL), jnp.float32),
        "ln_emb_b": jnp.zeros((1, D_MODEL), jnp.float32),
        "ln_final_g": jnp.ones((1, D_MODEL), jnp.float32),
        "ln_final_b": jnp.zeros((1, D_MODEL), jnp.float32),
        # per-layer params stacked on a leading N_LAYERS axis
        "ln1_g": jnp.ones((N_LAYERS, 1, D_MODEL), jnp.float32),
        "ln1_b": jnp.zeros((N_LAYERS, 1, D_MODEL), jnp.float32),
        "ln2_g": jnp.ones((N_LAYERS, 1, D_MODEL), jnp.float32),
        "ln2_b": jnp.zeros((N_LAYERS, 1, D_MODEL), jnp.float32),
        "w_qkv": nrm((N_LAYERS, D_MODEL, 3 * D_MODEL), dtype=bf16),
        "b_qkv": nrm((N_LAYERS, 1, 3 * D_MODEL)),
        "w_o": nrm((N_LAYERS, D_MODEL, D_MODEL), dtype=bf16),
        "b_o": nrm((N_LAYERS, 1, D_MODEL)),
        "w1": nrm((N_LAYERS, D_MODEL, D_FFN), dtype=bf16),
        "b1": nrm((N_LAYERS, 1, D_FFN)),
        "w2": nrm((N_LAYERS, D_FFN, D_MODEL), dtype=bf16),
        "b2": nrm((N_LAYERS, 1, D_MODEL)),
    }
    params["enc"] = enc
    return params


# --------------------------------- main --------------------------------------

if __name__ == "__main__":
    key = jax.random.PRNGKey(0)
    pkey, fkey = jax.random.split(key)
    params = init_params(pkey)

    B, L = 2, 24            # 2 videos x 24 frames
    H = W = 16
    frames = jax.random.normal(fkey, (B * L, 3, H, W), jnp.float32)
    # sequence length after TemporalConv ['K5','P2','K5','P2']:
    n_out = ((L - (K_CONV - 1)) // 2 - (K_CONV - 1)) // 2
    src_input = {
        "input_ids": frames,                       # stacked frames, NCHW
        "src_length_batch": [L] * B,
        "attention_mask": jnp.ones((B, n_out), jnp.float32),
    }

    out = image_clip_forward(params, src_input)
    jax.block_until_ready(out)
    assert out.shape == (B, D_MODEL) and out.dtype == jnp.float32
    assert bool(jnp.all(jnp.isfinite(out)))
    print("KERNEL_OK")
</pallas_src>

<mosaic_0001>
module attributes {stable_mosaic.version = 11 : i64} {
  func.func @_frame_feat_kernel(%arg0: i32, %arg1: memref<48x768xf32, #tpu.memory_space<vmem>>, %arg2: memref<3x128xf32, #tpu.memory_space<vmem>>, %arg3: memref<1x128xf32, #tpu.memory_space<vmem>>, %arg4: memref<48x128xf32, #tpu.memory_space<vmem>>) attributes {dimension_semantics = [#tpu.dimension_semantics<parallel>], iteration_bounds = array<i64: 1>, scalar_prefetch = 0 : i64, scratch_operands = 0 : i64, tpu.core_type = #tpu.core_type<tc>, window_params = [{transform_indices = @transform_0, window_bounds = array<i64: 48, 768>}, {pipeline_mode = #tpu.pipeline_mode<synchronous>, transform_indices = @transform_1, window_bounds = array<i64: 3, 128>}, {pipeline_mode = #tpu.pipeline_mode<synchronous>, transform_indices = @transform_2, window_bounds = array<i64: 1, 128>}, {transform_indices = @transform_3, window_bounds = array<i64: 48, 128>}]} {
    %c0 = arith.constant 0 : index
    %c0_0 = arith.constant 0 : index
    %0 = vector.load %arg1[%c0, %c0_0] : memref<48x768xf32, #tpu.memory_space<vmem>>, vector<48x768xf32>
    %c0_1 = arith.constant 0 : index
    %c0_2 = arith.constant 0 : index
    %1 = vector.load %arg2[%c0_1, %c0_2] : memref<3x128xf32, #tpu.memory_space<vmem>>, vector<3x128xf32>
    %cst = arith.constant 0.000000e+00 : f32
    %2 = vector.broadcast %cst : f32 to vector<48x128xf32>
    %3 = vector.extract_strided_slice %0 {offsets = [0, 0], sizes = [48, 256], strides = [1, 1]} : vector<48x768xf32> to vector<48x256xf32>
    %cst_3 = arith.constant dense<0.000000e+00> : vector<48xf32>
    %4 = vector.multi_reduction <add>, %3, %cst_3 [1] : vector<48x256xf32> to vector<48xf32>
    %5 = vector.shape_cast %4 : vector<48xf32> to vector<48x1xf32>
    %cst_4 = arith.constant 2.560000e+02 : f32
    %6 = vector.broadcast %cst_4 : f32 to vector<48x1xf32>
    %7 = arith.divf %5, %6 : vector<48x1xf32>
    %8 = vector.extract_strided_slice %1 {offsets = [0, 0], sizes = [1, 128], strides = [1, 1]} : vector<3x128xf32> to vector<1x128xf32>
    %9 = vector.broadcast %7 : vector<48x1xf32> to vector<48x128xf32>
    %10 = vector.broadcast %8 : vector<1x128xf32> to vector<48x128xf32>
    %11 = arith.mulf %9, %10 : vector<48x128xf32>
    %12 = arith.addf %2, %11 : vector<48x128xf32>
    %13 = vector.extract_strided_slice %0 {offsets = [0, 256], sizes = [48, 256], strides = [1, 1]} : vector<48x768xf32> to vector<48x256xf32>
    %cst_5 = arith.constant dense<0.000000e+00> : vector<48xf32>
    %14 = vector.multi_reduction <add>, %13, %cst_5 [1] : vector<48x256xf32> to vector<48xf32>
    %15 = vector.shape_cast %14 : vector<48xf32> to vector<48x1xf32>
    %cst_6 = arith.constant 2.560000e+02 : f32
    %16 = vector.broadcast %cst_6 : f32 to vector<48x1xf32>
    %17 = arith.divf %15, %16 : vector<48x1xf32>
    %18 = vector.extract_strided_slice %1 {offsets = [1, 0], sizes = [1, 128], strides = [1, 1]} : vector<3x128xf32> to vector<1x128xf32>
    %19 = vector.broadcast %17 : vector<48x1xf32> to vector<48x128xf32>
    %20 = vector.broadcast %18 : vector<1x128xf32> to vector<48x128xf32>
    %21 = arith.mulf %19, %20 : vector<48x128xf32>
    %22 = arith.addf %12, %21 : vector<48x128xf32>
    %23 = vector.extract_strided_slice %0 {offsets = [0, 512], sizes = [48, 256], strides = [1, 1]} : vector<48x768xf32> to vector<48x256xf32>
    %cst_7 = arith.constant dense<0.000000e+00> : vector<48xf32>
    %24 = vector.multi_reduction <add>, %23, %cst_7 [1] : vector<48x256xf32> to vector<48xf32>
    %25 = vector.shape_cast %24 : vector<48xf32> to vector<48x1xf32>
    %cst_8 = arith.constant 2.560000e+02 : f32
    %26 = vector.broadcast %cst_8 : f32 to vector<48x1xf32>
    %27 = arith.divf %25, %26 : vector<48x1xf32>
    %28 = vector.extract_strided_slice %1 {offsets = [2, 0], sizes = [1, 128], strides = [1, 1]} : vector<3x128xf32> to vector<1x128xf32>
    %29 = vector.broadcast %27 : vector<48x1xf32> to vector<48x128xf32>
    %30 = vector.broadcast %28 : vector<1x128xf32> to vector<48x128xf32>
    %31 = arith.mulf %29, %30 : vector<48x128xf32>
    %32 = arith.addf %22, %31 : vector<48x128xf32>
    %c0_9 = arith.constant 0 : index
    %c0_10 = arith.constant 0 : index
    %33 = vector.load %arg3[%c0_9, %c0_10] : memref<1x128xf32, #tpu.memory_space<vmem>>, vector<1x128xf32>
    %34 = vector.broadcast %33 : vector<1x128xf32> to vector<48x128xf32>
    %35 = arith.addf %32, %34 : vector<48x128xf32>
    %cst_11 = arith.constant 0.000000e+00 : f32
    %36 = vector.broadcast %cst_11 : f32 to vector<48x128xf32>
    %37 = arith.maximumf %35, %36 : vector<48x128xf32>
    %c0_12 = arith.constant 0 : index
    %c0_13 = arith.constant 0 : index
    %38 = vector.load %arg4[%c0_12, %c0_13] : memref<48x128xf32, #tpu.memory_space<vmem>>, vector<48x128xf32>
    tpu.vector_store %arg4[%c0_12, %c0_13], %37 {strides = array<i32>} : memref<48x128xf32, #tpu.memory_space<vmem>>, vector<48x128xf32>,
    return
  }
  func.func @transform_0(%arg0: i32) -> (i32, i32) {
    %c0_i32 = arith.constant 0 : i32
    %c0_i32_0 = arith.constant 0 : i32
    return %arg0, %c0_i32 : i32, i32
  }
  func.func @transform_1(%arg0: i32) -> (i32, i32) {
    %c0_i32 = arith.constant 0 : i32
    %c0_i32_0 = arith.constant 0 : i32
    %c0_i32_1 = arith.constant 0 : i32
    return %c0_i32, %c0_i32_0 : i32, i32
  }
  func.func @transform_2(%arg0: i32) -> (i32, i32) {
    %c0_i32 = arith.constant 0 : i32
    %c0_i32_0 = arith.constant 0 : i32
    %c0_i32_1 = arith.constant 0 : i32
    return %c0_i32, %c0_i32_0 : i32, i32
  }
  func.func @transform_3(%arg0: i32) -> (i32, i32) {
    %c0_i32 = arith.constant 0 : i32
    %c0_i32_0 = arith.constant 0 : i32
    return %arg0, %c0_i32 : i32, i32
  }
}

</mosaic_0001>

<llo_original>
// kernel: tpu_custom_call.1
$region0: #{tpu_custom_call.1}
  #allocation0 [shape = 'u32[]', space=smem, size = 0x4, offset = 0x4, fixed_abs, tag = 'smem constant byte address 0x4 - core index']
  #allocation1 [shape = 'u32[72,128]{1,0:T(1,128)}', space=vmem, size = 0x9000, scoped, tag = 'internal scratch']
  %s0 = inlined_call_operand.hbm [shape: f32[48,768], index: 0, kind: input, shape index: {}]
  %s1 = inlined_call_operand.hbm [shape: f32[3,128], index: 1, kind: input, shape index: {}]
  %s2 = inlined_call_operand.vmem [shape: f32[1,128], index: 2, kind: input, shape index: {}]
  %s3 = inlined_call_operand.hbm [shape: f32[48,128], index: 3, kind: output, shape index: {}]
  %s4 = sld [smem:[#allocation0]]
  $region30: #{tpu_custom_call.1} parent=0
    _
  %s6 = ssub.s32 1, %s4
  %s7 = scalar_select 0, %s6, %s4
  $region1: #{tpu_custom_call.1} parent=0
    #allocation2 [shape = 'u8[147456]{0}', space=vmem, size = 0x24000, scoped, tag = 'input window, operand 0, single buffered']
    #allocation3 [shape = 's32[1]{0}', space=sflag, size = 0x4, scoped, tag = 'scoped memory for tpu_custom_call.1']
    #allocation4 [shape = 's32[1]{0}', space=sflag, size = 0x4, scoped, tag = 'scoped memory for tpu_custom_call.1']
    #allocation5 [shape = 'u8[2048]{0}', space=vmem, size = 0x800, scoped, tag = 'input window, operand 1, single buffered']
    #allocation6 [shape = 's32[1]{0}', space=sflag, size = 0x4, scoped, tag = 'scoped memory for tpu_custom_call.1']
    #allocation7 [shape = 'u8[24576]{0}', space=vmem, size = 0x6000, scoped, tag = 'output window, operand 0, single buffered']
    %8 = vsyncpa [#allocation3], 0
    %9 = vsyncpa [#allocation6], 0
    %10 = vsyncpa [#allocation4], 0
    // Predicated region
    $region2: #{tpu_custom_call.1} parent=1 // pred_check
      _
    $region3: #{tpu_custom_call.1} parent=1 // pred_check_branch
      %12 = sbr.rel (0) target = $region5
    $region4: #{tpu_custom_call.1} parent=1 // pred_region
      %14 = vsyncadd [#allocation3], 0
      %s15 = sshll.u32 %s0, 4
      %s16 = int_to_ptr.hbm [resolvable:$true] %s15
      %s17 = sshll.u32 [#allocation2], 4
      %s18 = int_to_ptr.vmem [resolvable:$true] %s17
      %23 = dma.hbm_to_vmem [thread:$0]  %s16, 4608, %s18, [#allocation3], 768, 768, 48
    $region5: #{tpu_custom_call.1} parent=1 // pred_fallthru
      _
    // Predicated region
    $region6: #{tpu_custom_call.1} parent=1 // pred_check
      _
    $region7: #{tpu_custom_call.1} parent=1 // pred_check_branch
      %25 = sbr.rel (0) target = $region9
    $region8: #{tpu_custom_call.1} parent=1 // pred_region
      %27 = vsyncadd [#allocation6], 0
      %s29 = sshll.u32 %s1, 4
      %s30 = int_to_ptr.hbm [resolvable:$true] %s29
      %s31 = sshll.u32 [#allocation5], 4
      %s32 = int_to_ptr.vmem [resolvable:$true] %s31
      %34 = dma.hbm_to_vmem [thread:$0]  %s30, 64, %s32, [#allocation6]
    $region9: #{tpu_custom_call.1} parent=1 // pred_fallthru
      _
    // Predicated region
    $region10: #{tpu_custom_call.1} parent=1 // pred_check
      _
    $region11: #{tpu_custom_call.1} parent=1 // pred_check_branch
      %36 = sbr.rel (0) target = $region13
    $region12: #{tpu_custom_call.1} parent=1 // pred_region
      _
    $region13: #{tpu_custom_call.1} parent=1 // pred_fallthru
      _
    // Predicated region
    $region14: #{tpu_custom_call.1} parent=1 // pred_check
      _
    $region15: #{tpu_custom_call.1} parent=1 // pred_check_branch
      %38 = sbr.rel (0) target = $region17
    $region16: #{tpu_custom_call.1} parent=1 // pred_region
      %40 = dma.done [#allocation3], 4608
    $region17: #{tpu_custom_call.1} parent=1 // pred_fallthru
      _
    // Predicated region
    $region18: #{tpu_custom_call.1} parent=1 // pred_check
      _
    $region19: #{tpu_custom_call.1} parent=1 // pred_check_branch
      %42 = sbr.rel (0) target = $region21
    $region20: #{tpu_custom_call.1} parent=1 // pred_region
      %44 = dma.done [#allocation6], 64
    $region21: #{tpu_custom_call.1} parent=1 // pred_fallthru
      _
    %v45 = vld [vmem:[#allocation2] sm:$0xff]
    %v46 = vld [vmem:[#allocation2 + $0x8] sm:$0xff]
    %v47 = vld [vmem:[#allocation2 + $0x10] sm:$0xff]
    %v48 = vld [vmem:[#allocation2 + $0x18] sm:$0xff]
    %v49 = vld [vmem:[#allocation2 + $0x20] sm:$0xff]
    %v50 = vld [vmem:[#allocation2 + $0x28] sm:$0xff]
    %v51 = vld [vmem:[#allocation2 + $0x30] sm:$0xff]
    %v52 = vld [vmem:[#allocation2 + $0x38] sm:$0xff]
    %v53 = vld [vmem:[#allocation2 + $0x40] sm:$0xff]
    %v54 = vld [vmem:[#allocation2 + $0x48] sm:$0xff]
    %v55 = vld [vmem:[#allocation2 + $0x50] sm:$0xff]
    %v56 = vld [vmem:[#allocation2 + $0x58] sm:$0xff]
    %v57 = vld [vmem:[#allocation2 + $0x60] sm:$0xff]
    %v58 = vld [vmem:[#allocation2 + $0x68] sm:$0xff]
    %v59 = vld [vmem:[#allocation2 + $0x70] sm:$0xff]
    %v60 = vld [vmem:[#allocation2 + $0x78] sm:$0xff]
    %v61 = vld [vmem:[#allocation2 + $0x80] sm:$0xff]
    %v62 = vld [vmem:[#allocation2 + $0x88] sm:$0xff]
    %v63 = vld [vmem:[#allocation2 + $0x90] sm:$0xff]
    %v64 = vld [vmem:[#allocation2 + $0x98] sm:$0xff]
    %v65 = vld [vmem:[#allocation2 + $0xa0] sm:$0xff]
    %v66 = vld [vmem:[#allocation2 + $0xa8] sm:$0xff]
    %v67 = vld [vmem:[#allocation2 + $0xb0] sm:$0xff]
    %v68 = vld [vmem:[#allocation2 + $0xb8] sm:$0xff]
    %v69 = vld [vmem:[#allocation2 + $0xc0] sm:$0xff]
    %v70 = vld [vmem:[#allocation2 + $0xc8] sm:$0xff]
    %v71 = vld [vmem:[#allocation2 + $0xd0] sm:$0xff]
    %v72 = vld [vmem:[#allocation2 + $0xd8] sm:$0xff]
    %v73 = vld [vmem:[#allocation2 + $0xe0] sm:$0xff]
    %v74 = vld [vmem:[#allocation2 + $0xe8] sm:$0xff]
    %v75 = vld [vmem:[#allocation2 + $0xf0] sm:$0xff]
    %v76 = vld [vmem:[#allocation2 + $0xf8] sm:$0xff]
    %v77 = vld [vmem:[#allocation2 + $0x100] sm:$0xff]
    %v78 = vld [vmem:[#allocation2 + $0x108] sm:$0xff]
    %v79 = vld [vmem:[#allocation2 + $0x110] sm:$0xff]
    %v80 = vld [vmem:[#allocation2 + $0x118] sm:$0xff]
    %v81 = vld [vmem:[#allocation5] sm:$0x7]
    %v82 = vadd.f32 %v45, %v46
    %83 = vadd.xlane.f32.xlu0 %v82
    %v84 = vpop.xlane.xlu0 %83
    %v85 = vadd.f32 %v51, %v52
    %86 = vadd.xlane.f32.xlu0 %v85
    %v87 = vpop.xlane.xlu0 %86
    %v88 = vadd.f32 %v57, %v58
    %89 = vadd.xlane.f32.xlu0 %v88
    %v90 = vpop.xlane.xlu0 %89
    %v91 = vadd.f32 %v63, %v64
    %92 = vadd.xlane.f32.xlu0 %v91
    %v93 = vpop.xlane.xlu0 %92
    %v94 = vadd.f32 %v69, %v70
    %95 = vadd.xlane.f32.xlu0 %v94
    %v96 = vpop.xlane.xlu0 %95
    %v97 = vadd.f32 %v75, %v76
    %98 = vadd.xlane.f32.xlu0 %v97
    %v99 = vpop.xlane.xlu0 %98
    %v100 = vrcp.pop 256.0
    %v101 = vmul.f32 256.0, %v100
    %v102 = vsub.f32 1.0, %v101
    %v103 = vmul.f32 %v100, %v102
    %v104 = vadd.f32 %v100, %v103
    %vm105 = vweird.f32 %v100
    %v106 = vsel %vm105, %v100, %v104
    %v107 = vmul.f32 %v84, %v106
    %v108 = vmul.f32 %v87, %v106
    %v109 = vmul.f32 %v90, %v106
    %v110 = vmul.f32 %v93, %v106
    %v111 = vmul.f32 %v96, %v106
    %v112 = vmul.f32 %v99, %v106
    %v113 = vperm.slane %v81, 0
    %v114 = vmul.f32 %v107, %v113
    %v115 = vmul.f32 %v108, %v113
    %v116 = vmul.f32 %v109, %v113
    %v117 = vmul.f32 %v110, %v113
    %v118 = vmul.f32 %v111, %v113
    %v119 = vmul.f32 %v112, %v113
    %v120 = vadd.f32 %v114, 0.0
    %v121 = vadd.f32 %v115, 0.0
    %v122 = vadd.f32 %v116, 0.0
    %v123 = vadd.f32 %v117, 0.0
    %v124 = vadd.f32 %v118, 0.0
    %v125 = vadd.f32 %v119, 0.0
    %v126 = vadd.f32 %v47, %v48
    %127 = vadd.xlane.f32.xlu0 %v126
    %v128 = vpop.xlane.xlu0 %127
    %v129 = vadd.f32 %v53, %v54
    %130 = vadd.xlane.f32.xlu0 %v129
    %v131 = vpop.xlane.xlu0 %130
    %v132 = vadd.f32 %v59, %v60
    %133 = vadd.xlane.f32.xlu0 %v132
    %v134 = vpop.xlane.xlu0 %133
    %v135 = vadd.f32 %v65, %v66
    %136 = vadd.xlane.f32.xlu0 %v135
    %v137 = vpop.xlane.xlu0 %136
    %v138 = vadd.f32 %v71, %v72
    %139 = vadd.xlane.f32.xlu0 %v138
    %v140 = vpop.xlane.xlu0 %139
    %v141 = vadd.f32 %v77, %v78
    %142 = vadd.xlane.f32.xlu0 %v141
    %v143 = vpop.xlane.xlu0 %142
    %v144 = vmul.f32 %v128, %v106
    %v145 = vmul.f32 %v131, %v106
    %v146 = vmul.f32 %v134, %v106
    %v147 = vmul.f32 %v137, %v106
    %v148 = vmul.f32 %v140, %v106
    %v149 = vmul.f32 %v143, %v106
    %v150 = vperm.slane %v81, 1
    %v151 = vmul.f32 %v144, %v150
    %v152 = vmul.f32 %v145, %v150
    %v153 = vmul.f32 %v146, %v150
    %v154 = vmul.f32 %v147, %v150
    %v155 = vmul.f32 %v148, %v150
    %v156 = vmul.f32 %v149, %v150
    %v157 = vadd.f32 %v120, %v151
    %v158 = vadd.f32 %v121, %v152
    %v159 = vadd.f32 %v122, %v153
    %v160 = vadd.f32 %v123, %v154
    %v161 = vadd.f32 %v124, %v155
    %v162 = vadd.f32 %v125, %v156
    %v163 = vadd.f32 %v49, %v50
    %164 = vadd.xlane.f32.xlu0 %v163
    %v165 = vpop.xlane.xlu0 %164
    %v166 = vadd.f32 %v55, %v56
    %167 = vadd.xlane.f32.xlu0 %v166
    %v168 = vpop.xlane.xlu0 %167
    %v169 = vadd.f32 %v61, %v62
    %170 = vadd.xlane.f32.xlu0 %v169
    %v171 = vpop.xlane.xlu0 %170
    %v172 = vadd.f32 %v67, %v68
    %173 = vadd.xlane.f32.xlu0 %v172
    %v174 = vpop.xlane.xlu0 %173
    %v175 = vadd.f32 %v73, %v74
    %176 = vadd.xlane.f32.xlu0 %v175
    %v177 = vpop.xlane.xlu0 %176
    %v178 = vadd.f32 %v79, %v80
    %179 = vadd.xlane.f32.xlu0 %v178
    %v180 = vpop.xlane.xlu0 %179
    %v181 = vmul.f32 %v165, %v106
    %v182 = vmul.f32 %v168, %v106
    %v183 = vmul.f32 %v171, %v106
    %v184 = vmul.f32 %v174, %v106
    %v185 = vmul.f32 %v177, %v106
    %v186 = vmul.f32 %v180, %v106
    %v187 = vperm.slane %v81, 2
    %v188 = vmul.f32 %v181, %v187
    %v189 = vmul.f32 %v182, %v187
    %v190 = vmul.f32 %v183, %v187
    %v191 = vmul.f32 %v184, %v187
    %v192 = vmul.f32 %v185, %v187
    %v193 = vmul.f32 %v186, %v187
    %v194 = vadd.f32 %v157, %v188
    %v195 = vadd.f32 %v158, %v189
    %v196 = vadd.f32 %v159, %v190
    %v197 = vadd.f32 %v160, %v191
    %v198 = vadd.f32 %v161, %v192
    %v199 = vadd.f32 %v162, %v193
    %v200 = vld [vmem:[%s2] sm:$0x1]
    %v202 = vperm.slane %v200, 0
    %v204 = vadd.f32 %v194, %v202
    %v205 = vadd.f32 %v195, %v202
    %v206 = vadd.f32 %v196, %v202
    %v207 = vadd.f32 %v197, %v202
    %v208 = vadd.f32 %v198, %v202
    %v209 = vadd.f32 %v199, %v202
    %v210 = vmax.f32 %v204, 0.0
    %v211 = vmax.f32 %v205, 0.0
    %v212 = vmax.f32 %v206, 0.0
    %v213 = vmax.f32 %v207, 0.0
    %v214 = vmax.f32 %v208, 0.0
    %v215 = vmax.f32 %v209, 0.0
    %216 = vst [vmem:[#allocation7] sm:$0xff] %v210
    %217 = vst [vmem:[#allocation7 + $0x8] sm:$0xff] %v211
    %218 = vst [vmem:[#allocation7 + $0x10] sm:$0xff] %v212
    %219 = vst [vmem:[#allocation7 + $0x18] sm:$0xff] %v213
    %220 = vst [vmem:[#allocation7 + $0x20] sm:$0xff] %v214
    %221 = vst [vmem:[#allocation7 + $0x28] sm:$0xff] %v215
    // Predicated region
    $region22: #{tpu_custom_call.1} parent=1 // pred_check
      _
    $region23: #{tpu_custom_call.1} parent=1 // pred_check_branch
      %223 = sbr.rel (0) target = $region25
    $region24: #{tpu_custom_call.1} parent=1 // pred_region
      %225 = vsyncadd [#allocation4], 0
      %s226 = sshll.u32 [#allocation7], 4
      %s227 = int_to_ptr.vmem [resolvable:$true] %s226
      %s228 = sshll.u32 %s3, 4
      %s229 = int_to_ptr.hbm [resolvable:$true] %s228
      %234 = dma.vmem_to_hbm [thread:$0]  %s227, 768, %s229, [#allocation4], 128, 128, 8
    $region25: #{tpu_custom_call.1} parent=1 // pred_fallthru
      _
    // Predicated region
    $region26: #{tpu_custom_call.1} parent=1 // pred_check
      _
    $region27: #{tpu_custom_call.1} parent=1 // pred_check_branch
      %236 = sbr.rel (0) target = $region29
    $region28: #{tpu_custom_call.1} parent=1 // pred_region
      %238 = dma.done [#allocation4], 768
    $region29: #{tpu_custom_call.1} parent=1 // pred_fallthru
      _
    %239 = vsyncpa [#allocation3], 1
    %240 = vsyncpa [#allocation6], 1
    %241 = vsyncpa [#allocation4], 1

</llo_original>
